<compile_context>
chip_gen: v6e
topology: v6e:2x2x1
jax: 0.10.0
libtpu: 0.0.40
codegen_flags: <defaults>
</compile_context>

<pallas_src>
import functools

import jax
import jax.numpy as jnp
import numpy as np
from jax import lax
from jax.experimental import pallas as pl
from jax.experimental.pallas import tpu as pltpu


def chamfer_kernel(x_pos_ref, x_neg_ref, y_pos_ref, y_neg_ref, o_ref, *,
                   bblk, bt, n):
    """Input refs: (Bblk, 8, N) augmented clouds.  o_ref: (1, 1, N) lane partial."""
    base = pl.program_id(0) * bblk

    def body(b, acc):
        xp = x_pos_ref[b]                        # (8, N): [x, 1, |x|^2, 0...]
        xn = x_neg_ref[b]                        # (8, N): [-2x, |x|^2, 1, 0...]
        yp = y_pos_ref[b]                        # (8, N): [y, 1, |y|^2, 0...]
        yn = y_neg_ref[b]                        # (8, N): [-2y, |y|^2, 1, 0...]
        # d2[i, j]  = |x_j|^2 + |y_i|^2 - 2 y_i.x_j     (rows = y, cols = x)
        # d2t[j, i] = same matrix, transposed            (rows = x, cols = y)
        # Two K=8 MXU matmuls contracting the sublane axis of both operands
        # -> no transposes, and both mins become sublane (axis=0) reductions.
        d2 = lax.dot_general(yn, xp, (((0,), (0,)), ((), ())),
                             preferred_element_type=jnp.float32)    # (N, N)
        d2t = lax.dot_general(xn, yp, (((0,), (0,)), ((), ())),
                              preferred_element_type=jnp.float32)   # (N, N)
        # sqrt is monotone: take mins on squared distances; clamp/sqrt only the
        # 2N minima (max(.,0) commutes with min).
        min1 = jnp.min(d2, axis=0, keepdims=True)     # (1, N) nearest y per x pt
        min2 = jnp.min(d2t, axis=0, keepdims=True)    # (1, N) nearest x per y pt
        contrib = (jnp.sqrt(1e-6 + jnp.maximum(min1, 0.0)) +
                   jnp.sqrt(1e-6 + jnp.maximum(min2, 0.0)))         # (1, N)
        if bt % bblk:                           # trace-time: mask padded clouds
            contrib = jnp.where(base + b < bt, contrib, 0.0)
        return acc + contrib

    acc = lax.fori_loop(0, bblk, body,
                        jnp.zeros((1, n), jnp.float32),
                        unroll=min(2, bblk))
    o_ref[...] = acc.reshape(1, 1, n)           # lane-dense, unmasked store


def _augment(c):
    """(BT, N, 3) cloud -> pos/neg (BT, 8, N) coords-on-sublane augmented tiles."""
    bt, n, cdim = c.shape
    csq = jnp.sum(c * c, axis=-1, keepdims=True)                   # (BT, N, 1)
    ones = jnp.ones_like(csq)
    zpad = jnp.zeros((bt, n, 8 - (cdim + 2)), c.dtype)
    pos = jnp.concatenate([c, ones, csq, zpad], axis=-1)           # (BT, N, 8)
    neg = jnp.concatenate([-2.0 * c, csq, ones, zpad], axis=-1)    # (BT, N, 8)
    return jnp.transpose(pos, (0, 2, 1)), jnp.transpose(neg, (0, 2, 1))


@functools.partial(jax.jit, static_argnames=("block_clouds",))
def chamfer_loss(x, y, block_clouds=32):
    """x, y: (B, T, N, 3) -> scalar loss, same semantics as the PyTorch module."""
    B, T, N, C = x.shape
    BT = B * T
    # Clouds per grid step; keep >= 2 grid steps so v7x can use both TCs.
    bblk = max(1, min(block_clouds, pl.cdiv(BT, 2)))
    num_blocks = pl.cdiv(BT, bblk)
    bt_pad = num_blocks * bblk

    xr = x.reshape(BT, N, C).astype(jnp.float32)
    yr = y.reshape(BT, N, C).astype(jnp.float32)
    x_pos, x_neg = _augment(xr)                  # (BT, 8, N) each
    y_pos, y_neg = _augment(yr)
    if bt_pad != BT:
        pad = ((0, bt_pad - BT), (0, 0), (0, 0))
        x_pos = jnp.pad(x_pos, pad)
        x_neg = jnp.pad(x_neg, pad)
        y_pos = jnp.pad(y_pos, pad)
        y_neg = jnp.pad(y_neg, pad)

    kernel = functools.partial(chamfer_kernel, bblk=bblk, bt=BT, n=N)
    in_spec = pl.BlockSpec((bblk, 8, N), lambda g: (g, 0, 0))
    partials = pl.pallas_call(
        kernel,
        out_shape=jax.ShapeDtypeStruct((num_blocks, 1, N), jnp.float32),
        grid_spec=pltpu.PrefetchScalarGridSpec(
            num_scalar_prefetch=0,
            grid=(num_blocks,),
            in_specs=[in_spec, in_spec, in_spec, in_spec],
            out_specs=pl.BlockSpec((1, 1, N), lambda g: (g, 0, 0)),
        ),
        compiler_params=pltpu.CompilerParams(
            # Each grid step owns its output block -> fully parallel grid.
            dimension_semantics=("parallel",)),
    )(x_pos, x_neg, y_pos, y_neg)

    return jnp.sum(partials) / jnp.float32(BT * N)


def chamfer_loss_ref(x, y):
    """Pure-JAX reference mirroring the PyTorch code exactly."""
    B, T, N, C = x.shape
    xr = x.reshape(B * T, N, C).astype(jnp.float32)
    yr = y.reshape(B * T, N, C).astype(jnp.float32)
    diff = xr[:, None, :, :] - yr[:, :, None, :]              # (BT, N, N, 3)
    dist = jnp.sqrt(1e-6 + jnp.sum(diff * diff, axis=3))      # (BT, N, N)
    return jnp.mean(jnp.min(dist, axis=1)) + jnp.mean(jnp.min(dist, axis=2))


if __name__ == "__main__":
    B, T, N, C = 2, 2, 128, 3
    key = jax.random.PRNGKey(0)
    kx, ky = jax.random.split(key)
    x = jax.random.normal(kx, (B, T, N, C), dtype=jnp.float32)
    y = jax.random.normal(ky, (B, T, N, C), dtype=jnp.float32)

    out = jax.block_until_ready(chamfer_loss(x, y))
    ref = jax.block_until_ready(chamfer_loss_ref(x, y))

    np.testing.assert_allclose(np.asarray(out), np.asarray(ref), rtol=1e-4, atol=1e-4)
    print("KERNEL_OK")
</pallas_src>

<mosaic_0001>
module attributes {stable_mosaic.version = 11 : i64} {
  func.func @chamfer_kernel(%arg0: i32, %arg1: memref<2x8x128xf32, #tpu.memory_space<vmem>>, %arg2: memref<2x8x128xf32, #tpu.memory_space<vmem>>, %arg3: memref<2x8x128xf32, #tpu.memory_space<vmem>>, %arg4: memref<2x8x128xf32, #tpu.memory_space<vmem>>, %arg5: memref<1x1x128xf32, #tpu.memory_space<vmem>>) attributes {dimension_semantics = [#tpu.dimension_semantics<parallel>], iteration_bounds = array<i64: 2>, scalar_prefetch = 0 : i64, scratch_operands = 0 : i64, tpu.core_type = #tpu.core_type<tc>, window_params = [{transform_indices = @transform_0, window_bounds = array<i64: 2, 8, 128>}, {transform_indices = @transform_1, window_bounds = array<i64: 2, 8, 128>}, {transform_indices = @transform_2, window_bounds = array<i64: 2, 8, 128>}, {transform_indices = @transform_3, window_bounds = array<i64: 2, 8, 128>}, {transform_indices = @transform_4, window_bounds = array<i64: 1, 1, 128>}]} {
    %cst = arith.constant 0.000000e+00 : f32
    %0 = vector.broadcast %cst : f32 to vector<1x128xf32>
    %c0_i32 = arith.constant 0 : i32
    %1 = arith.index_cast %c0_i32 : i32 to index
    %c0 = arith.constant 0 : index
    %c0_0 = arith.constant 0 : index
    %2 = vector.load %arg1[%1, %c0, %c0_0] : memref<2x8x128xf32, #tpu.memory_space<vmem>>, vector<1x8x128xf32>
    %3 = vector.shape_cast %2 : vector<1x8x128xf32> to vector<8x128xf32>
    %4 = arith.index_cast %c0_i32 : i32 to index
    %c0_1 = arith.constant 0 : index
    %c0_2 = arith.constant 0 : index
    %5 = vector.load %arg2[%4, %c0_1, %c0_2] : memref<2x8x128xf32, #tpu.memory_space<vmem>>, vector<1x8x128xf32>
    %6 = vector.shape_cast %5 : vector<1x8x128xf32> to vector<8x128xf32>
    %7 = arith.index_cast %c0_i32 : i32 to index
    %c0_3 = arith.constant 0 : index
    %c0_4 = arith.constant 0 : index
    %8 = vector.load %arg3[%7, %c0_3, %c0_4] : memref<2x8x128xf32, #tpu.memory_space<vmem>>, vector<1x8x128xf32>
    %9 = vector.shape_cast %8 : vector<1x8x128xf32> to vector<8x128xf32>
    %10 = arith.index_cast %c0_i32 : i32 to index
    %c0_5 = arith.constant 0 : index
    %c0_6 = arith.constant 0 : index
    %11 = vector.load %arg4[%10, %c0_5, %c0_6] : memref<2x8x128xf32, #tpu.memory_space<vmem>>, vector<1x8x128xf32>
    %12 = vector.shape_cast %11 : vector<1x8x128xf32> to vector<8x128xf32>
    %cst_7 = arith.constant dense<0.000000e+00> : vector<128x128xf32>
    %13 = tpu.matmul %12, %3, %cst_7 {dimension_numbers = #tpu.dot_dimension_numbers<[0], [0], [1], [1], [0, 1, 1, 1], [], []>} : vector<8x128xf32>, vector<8x128xf32>, vector<128x128xf32> -> vector<128x128xf32>
    %cst_8 = arith.constant dense<0.000000e+00> : vector<128x128xf32>
    %14 = tpu.matmul %6, %9, %cst_8 {dimension_numbers = #tpu.dot_dimension_numbers<[0], [0], [1], [1], [0, 1, 1, 1], [], []>} : vector<8x128xf32>, vector<8x128xf32>, vector<128x128xf32> -> vector<128x128xf32>
    %cst_9 = arith.constant dense<0x7F800000> : vector<128xf32>
    %15 = vector.multi_reduction <minimumf>, %13, %cst_9 [0] : vector<128x128xf32> to vector<128xf32>
    %16 = vector.shape_cast %15 : vector<128xf32> to vector<1x128xf32>
    %cst_10 = arith.constant dense<0x7F800000> : vector<128xf32>
    %17 = vector.multi_reduction <minimumf>, %14, %cst_10 [0] : vector<128x128xf32> to vector<128xf32>
    %18 = vector.shape_cast %17 : vector<128xf32> to vector<1x128xf32>
    %cst_11 = arith.constant 0.000000e+00 : f32
    %19 = vector.broadcast %cst_11 : f32 to vector<1x128xf32>
    %20 = arith.maximumf %16, %19 : vector<1x128xf32>
    %cst_12 = arith.constant 9.99999997E-7 : f32
    %21 = vector.broadcast %cst_12 : f32 to vector<1x128xf32>
    %22 = arith.addf %21, %20 : vector<1x128xf32>
    %23 = math.sqrt %22 : vector<1x128xf32>
    %cst_13 = arith.constant 0.000000e+00 : f32
    %24 = vector.broadcast %cst_13 : f32 to vector<1x128xf32>
    %25 = arith.maximumf %18, %24 : vector<1x128xf32>
    %cst_14 = arith.constant 9.99999997E-7 : f32
    %26 = vector.broadcast %cst_14 : f32 to vector<1x128xf32>
    %27 = arith.addf %26, %25 : vector<1x128xf32>
    %28 = math.sqrt %27 : vector<1x128xf32>
    %29 = arith.addf %23, %28 : vector<1x128xf32>
    %30 = arith.addf %0, %29 : vector<1x128xf32>
    %c1_i32 = arith.constant 1 : i32
    %31 = arith.index_cast %c1_i32 : i32 to index
    %c0_15 = arith.constant 0 : index
    %c0_16 = arith.constant 0 : index
    %32 = vector.load %arg1[%31, %c0_15, %c0_16] : memref<2x8x128xf32, #tpu.memory_space<vmem>>, vector<1x8x128xf32>
    %33 = vector.shape_cast %32 : vector<1x8x128xf32> to vector<8x128xf32>
    %34 = arith.index_cast %c1_i32 : i32 to index
    %c0_17 = arith.constant 0 : index
    %c0_18 = arith.constant 0 : index
    %35 = vector.load %arg2[%34, %c0_17, %c0_18] : memref<2x8x128xf32, #tpu.memory_space<vmem>>, vector<1x8x128xf32>
    %36 = vector.shape_cast %35 : vector<1x8x128xf32> to vector<8x128xf32>
    %37 = arith.index_cast %c1_i32 : i32 to index
    %c0_19 = arith.constant 0 : index
    %c0_20 = arith.constant 0 : index
    %38 = vector.load %arg3[%37, %c0_19, %c0_20] : memref<2x8x128xf32, #tpu.memory_space<vmem>>, vector<1x8x128xf32>
    %39 = vector.shape_cast %38 : vector<1x8x128xf32> to vector<8x128xf32>
    %40 = arith.index_cast %c1_i32 : i32 to index
    %c0_21 = arith.constant 0 : index
    %c0_22 = arith.constant 0 : index
    %41 = vector.load %arg4[%40, %c0_21, %c0_22] : memref<2x8x128xf32, #tpu.memory_space<vmem>>, vector<1x8x128xf32>
    %42 = vector.shape_cast %41 : vector<1x8x128xf32> to vector<8x128xf32>
    %cst_23 = arith.constant dense<0.000000e+00> : vector<128x128xf32>
    %43 = tpu.matmul %42, %33, %cst_23 {dimension_numbers = #tpu.dot_dimension_numbers<[0], [0], [1], [1], [0, 1, 1, 1], [], []>} : vector<8x128xf32>, vector<8x128xf32>, vector<128x128xf32> -> vector<128x128xf32>
    %cst_24 = arith.constant dense<0.000000e+00> : vector<128x128xf32>
    %44 = tpu.matmul %36, %39, %cst_24 {dimension_numbers = #tpu.dot_dimension_numbers<[0], [0], [1], [1], [0, 1, 1, 1], [], []>} : vector<8x128xf32>, vector<8x128xf32>, vector<128x128xf32> -> vector<128x128xf32>
    %cst_25 = arith.constant dense<0x7F800000> : vector<128xf32>
    %45 = vector.multi_reduction <minimumf>, %43, %cst_25 [0] : vector<128x128xf32> to vector<128xf32>
    %46 = vector.shape_cast %45 : vector<128xf32> to vector<1x128xf32>
    %cst_26 = arith.constant dense<0x7F800000> : vector<128xf32>
    %47 = vector.multi_reduction <minimumf>, %44, %cst_26 [0] : vector<128x128xf32> to vector<128xf32>
    %48 = vector.shape_cast %47 : vector<128xf32> to vector<1x128xf32>
    %cst_27 = arith.constant 0.000000e+00 : f32
    %49 = vector.broadcast %cst_27 : f32 to vector<1x128xf32>
    %50 = arith.maximumf %46, %49 : vector<1x128xf32>
    %cst_28 = arith.constant 9.99999997E-7 : f32
    %51 = vector.broadcast %cst_28 : f32 to vector<1x128xf32>
    %52 = arith.addf %51, %50 : vector<1x128xf32>
    %53 = math.sqrt %52 : vector<1x128xf32>
    %cst_29 = arith.constant 0.000000e+00 : f32
    %54 = vector.broadcast %cst_29 : f32 to vector<1x128xf32>
    %55 = arith.maximumf %48, %54 : vector<1x128xf32>
    %cst_30 = arith.constant 9.99999997E-7 : f32
    %56 = vector.broadcast %cst_30 : f32 to vector<1x128xf32>
    %57 = arith.addf %56, %55 : vector<1x128xf32>
    %58 = math.sqrt %57 : vector<1x128xf32>
    %59 = arith.addf %53, %58 : vector<1x128xf32>
    %60 = arith.addf %30, %59 : vector<1x128xf32>
    %c2_i32 = arith.constant 2 : i32
    %61 = vector.shape_cast %60 : vector<1x128xf32> to vector<1x1x128xf32>
    %c0_31 = arith.constant 0 : index
    %c0_32 = arith.constant 0 : index
    %c0_33 = arith.constant 0 : index
    %62 = vector.load %arg5[%c0_31, %c0_32, %c0_33] : memref<1x1x128xf32, #tpu.memory_space<vmem>>, vector<1x1x128xf32>
    tpu.vector_store %arg5[%c0_31, %c0_32, %c0_33], %61 {strides = array<i32>} : memref<1x1x128xf32, #tpu.memory_space<vmem>>, vector<1x1x128xf32>,
    return
  }
  func.func @transform_0(%arg0: i32) -> (i32, i32, i32) {
    %c0_i32 = arith.constant 0 : i32
    %c0_i32_0 = arith.constant 0 : i32
    %c0_i32_1 = arith.constant 0 : i32
    return %arg0, %c0_i32, %c0_i32_0 : i32, i32, i32
  }
  func.func @transform_1(%arg0: i32) -> (i32, i32, i32) {
    %c0_i32 = arith.constant 0 : i32
    %c0_i32_0 = arith.constant 0 : i32
    %c0_i32_1 = arith.constant 0 : i32
    return %arg0, %c0_i32, %c0_i32_0 : i32, i32, i32
  }
  func.func @transform_2(%arg0: i32) -> (i32, i32, i32) {
    %c0_i32 = arith.constant 0 : i32
    %c0_i32_0 = arith.constant 0 : i32
    %c0_i32_1 = arith.constant 0 : i32
    return %arg0, %c0_i32, %c0_i32_0 : i32, i32, i32
  }
  func.func @transform_3(%arg0: i32) -> (i32, i32, i32) {
    %c0_i32 = arith.constant 0 : i32
    %c0_i32_0 = arith.constant 0 : i32
    %c0_i32_1 = arith.constant 0 : i32
    return %arg0, %c0_i32, %c0_i32_0 : i32, i32, i32
  }
  func.func @transform_4(%arg0: i32) -> (i32, i32, i32) {
    %c0_i32 = arith.constant 0 : i32
    %c0_i32_0 = arith.constant 0 : i32
    %c0_i32_1 = arith.constant 0 : i32
    return %arg0, %c0_i32, %c0_i32_0 : i32, i32, i32
  }
}

</mosaic_0001>

<llo_original>
// kernel: chamfer_loss.1
$region0: #{chamfer_loss.1}
  #allocation0 [shape = 'u32[]', space=smem, size = 0x4, offset = 0x4, fixed_abs, tag = 'smem constant byte address 0x4 - core index']
  #allocation1 [shape = 'u32[144,128]{1,0:T(1,128)}', space=vmem, size = 0x12000, scoped, tag = 'internal scratch']
  %s0 = inlined_call_operand.vmem [shape: f32[4,8,128], index: 0, kind: input, shape index: {}]
  %s1 = inlined_call_operand.vmem [shape: f32[4,8,128], index: 1, kind: input, shape index: {}]
  %s2 = inlined_call_operand.vmem [shape: f32[4,8,128], index: 2, kind: input, shape index: {}]
  %s3 = inlined_call_operand.vmem [shape: f32[4,8,128], index: 3, kind: input, shape index: {}]
  %s4 = inlined_call_operand.vmem [shape: f32[2,1,128], index: 4, kind: output, shape index: {}]
  %s5 = sld [smem:[#allocation0]]
  $region49: #{chamfer_loss.1} parent=0
    _
  %s7 = ssub.s32 1, %s5
  %s8 = scalar_select 0, %s7, %s5
  loop: start=0, step=1, limit=4
  $region2: #{chamfer_loss.1} parent=0 // loop_pre_header
    _
  $region3: #{chamfer_loss.1} parent=0 // loop_header
    %s10 = sphi 0, %s14
    %p11 = scmp.ge.s32.totalorder %s10, 4
    %s20 = sphi 0, %s22
    %s23 = sphi 0, %s20
    %s24 = sphi 0, %s23
    %s40 = sphi 0, %s24
    %s46 = sphi 0, %s48
    %s49 = sphi 0, %s46
    %s50 = sphi 0, %s49
    %s66 = sphi 0, %s50
    %s72 = sphi 0, %s74
    %s75 = sphi 0, %s72
    %s76 = sphi 0, %s75
    %s92 = sphi 0, %s76
    %s98 = sphi 0, %s100
    %s101 = sphi 0, %s98
    %s102 = sphi 0, %s101
    %s118 = sphi 0, %s102
    %s124 = sphi 0, %s126
    %s127 = sphi 0, %s124
    %s128 = sphi 0, %s127
    %s144 = sphi 0, %s128
  $region4: #{chamfer_loss.1} parent=0 // loop_header_branch
    %13 = sbr.rel (%p11) target = $region8
  $region5: #{chamfer_loss.1} parent=0 // loop_body
    %s15 = ssub.s32 %s10, 1
    %s16 = ssub.s32 %s10, 2
    %s17 = sadd.s32 %s10, 1
    %s18 = ssub.s32 %s10, %s17
    %p19 = scmp.eq.s32.totalorder %s18, 0
    %s21 = sadd.s32 %s20, 1
    %s22 = scalar_select %p19, %s20, %s21
    %p25 = pneg %p19
    %p26 = scmp.eq.s32.totalorder %s10, 1
    %p27 = por %p25, %p26
    %p28 = scmp.ne.s32.totalorder %s20, %s23
    %p29 = scmp.eq.s32.totalorder %s10, 0
    %p30 = por %p28, %p29
    %p31 = scmp.ne.s32.totalorder %s20, %s23
    %p32 = scmp.eq.s32.totalorder %s15, 1
    %p33 = por %p31, %p32
    %p34 = scmp.ne.s32.totalorder %s23, %s24
    %p35 = scmp.eq.s32.totalorder %s15, 0
    %p36 = por %p34, %p35
    %p37 = scmp.ne.s32.totalorder %s23, %s24
    %p38 = scmp.eq.s32.totalorder %s16, 1
    %p39 = por %p37, %p38
    %p41 = scmp.ne.s32.totalorder %s24, %s40
    %p42 = scmp.eq.s32.totalorder %s16, 0
    %p43 = por %p41, %p42
    %s44 = ssub.s32 %s10, %s17
    %p45 = scmp.eq.s32.totalorder %s44, 0
    %s47 = sadd.s32 %s46, 1
    %s48 = scalar_select %p45, %s46, %s47
    %p51 = pneg %p45
    %p52 = scmp.eq.s32.totalorder %s10, 1
    %p53 = por %p51, %p52
    %p54 = scmp.ne.s32.totalorder %s46, %s49
    %p55 = scmp.eq.s32.totalorder %s10, 0
    %p56 = por %p54, %p55
    %p57 = scmp.ne.s32.totalorder %s46, %s49
    %p58 = scmp.eq.s32.totalorder %s15, 1
    %p59 = por %p57, %p58
    %p60 = scmp.ne.s32.totalorder %s49, %s50
    %p61 = scmp.eq.s32.totalorder %s15, 0
    %p62 = por %p60, %p61
    %p63 = scmp.ne.s32.totalorder %s49, %s50
    %p64 = scmp.eq.s32.totalorder %s16, 1
    %p65 = por %p63, %p64
    %p67 = scmp.ne.s32.totalorder %s50, %s66
    %p68 = scmp.eq.s32.totalorder %s16, 0
    %p69 = por %p67, %p68
    %s70 = ssub.s32 %s10, %s17
    %p71 = scmp.eq.s32.totalorder %s70, 0
    %s73 = sadd.s32 %s72, 1
    %s74 = scalar_select %p71, %s72, %s73
    %p77 = pneg %p71
    %p78 = scmp.eq.s32.totalorder %s10, 1
    %p79 = por %p77, %p78
    %p80 = scmp.ne.s32.totalorder %s72, %s75
    %p81 = scmp.eq.s32.totalorder %s10, 0
    %p82 = por %p80, %p81
    %p83 = scmp.ne.s32.totalorder %s72, %s75
    %p84 = scmp.eq.s32.totalorder %s15, 1
    %p85 = por %p83, %p84
    %p86 = scmp.ne.s32.totalorder %s75, %s76
    %p87 = scmp.eq.s32.totalorder %s15, 0
    %p88 = por %p86, %p87
    %p89 = scmp.ne.s32.totalorder %s75, %s76
    %p90 = scmp.eq.s32.totalorder %s16, 1
    %p91 = por %p89, %p90
    %p93 = scmp.ne.s32.totalorder %s76, %s92
    %p94 = scmp.eq.s32.totalorder %s16, 0
    %p95 = por %p93, %p94
    %s96 = ssub.s32 %s10, %s17
    %p97 = scmp.eq.s32.totalorder %s96, 0
    %s99 = sadd.s32 %s98, 1
    %s100 = scalar_select %p97, %s98, %s99
    %p103 = pneg %p97
    %p104 = scmp.eq.s32.totalorder %s10, 1
    %p105 = por %p103, %p104
    %p106 = scmp.ne.s32.totalorder %s98, %s101
    %p107 = scmp.eq.s32.totalorder %s10, 0
    %p108 = por %p106, %p107
    %p109 = scmp.ne.s32.totalorder %s98, %s101
    %p110 = scmp.eq.s32.totalorder %s15, 1
    %p111 = por %p109, %p110
    %p112 = scmp.ne.s32.totalorder %s101, %s102
    %p113 = scmp.eq.s32.totalorder %s15, 0
    %p114 = por %p112, %p113
    %p115 = scmp.ne.s32.totalorder %s101, %s102
    %p116 = scmp.eq.s32.totalorder %s16, 1
    %p117 = por %p115, %p116
    %p119 = scmp.ne.s32.totalorder %s102, %s118
    %p120 = scmp.eq.s32.totalorder %s16, 0
    %p121 = por %p119, %p120
    %s122 = ssub.s32 %s10, %s17
    %p123 = scmp.eq.s32.totalorder %s122, 0
    %s125 = sadd.s32 %s124, 1
    %s126 = scalar_select %p123, %s124, %s125
    %p129 = pneg %p123
    %p130 = scmp.eq.s32.totalorder %s10, 1
    %p131 = por %p129, %p130
    %p132 = scmp.ne.s32.totalorder %s124, %s127
    %p133 = scmp.eq.s32.totalorder %s10, 0
    %p134 = por %p132, %p133
    %p135 = scmp.ne.s32.totalorder %s124, %s127
    %p136 = scmp.eq.s32.totalorder %s15, 1
    %p137 = por %p135, %p136
    %p138 = scmp.ne.s32.totalorder %s127, %s128
    %p139 = scmp.eq.s32.totalorder %s15, 0
    %p140 = por %p138, %p139
    %p141 = scmp.ne.s32.totalorder %s127, %s128
    %p142 = scmp.eq.s32.totalorder %s16, 1
    %p143 = por %p141, %p142
    %p145 = scmp.ne.s32.totalorder %s128, %s144
    %p146 = scmp.eq.s32.totalorder %s16, 0
    %p147 = por %p145, %p146
    %p148 = scmp.le.s32.totalorder 1, %s10
    %p149 = scmp.lt.s32.totalorder %s10, 3
    %p150 = pnand %p148, %p149
    %p151 = pneg %p150
    // Predicated region
    $region9: #{chamfer_loss.1} parent=5 // pred_check
      _
    $region10: #{chamfer_loss.1} parent=5 // pred_check_branch
      %153 = sbr.rel (%p150) target = $region12
    $region11: #{chamfer_loss.1} parent=5 // pred_region
      %s154 = ssub.s32 %s10, 1
    $region12: #{chamfer_loss.1} parent=5 // pred_fallthru
      _
    %p155 = scmp.lt.s32.totalorder %s10, 2
    // Predicated region
    $region13: #{chamfer_loss.1} parent=5 // pred_check
      %p156 = pneg %p155
    $region14: #{chamfer_loss.1} parent=5 // pred_check_branch
      %158 = sbr.rel (%p156) target = $region16
    $region15: #{chamfer_loss.1} parent=5 // pred_region
      // Predicated region
      $region17: #{chamfer_loss.1} parent=15 // pred_check
        %p159 = pneg %p30
      $region18: #{chamfer_loss.1} parent=15 // pred_check_branch
        %161 = sbr.rel (%p159) target = $region20
      $region19: #{chamfer_loss.1} parent=15 // pred_region
        %s162 = smul.u32 2, %s10
        %p163 = scmp.lt.s32.totalorder %s162, 3
        %s164 = scalar_select %p163, %s162, 3
        %s165 = smul.addr %s164, 8
        %s166 = scalar_lea.vmem %s0, %s165
        %s167 = smul.u32 2, %s10
      $region20: #{chamfer_loss.1} parent=15 // pred_fallthru
        _
      // Predicated region
      $region21: #{chamfer_loss.1} parent=15 // pred_check
        %p168 = pneg %p56
      $region22: #{chamfer_loss.1} parent=15 // pred_check_branch
        %170 = sbr.rel (%p168) target = $region24
      $region23: #{chamfer_loss.1} parent=15 // pred_region
        %s171 = smul.u32 2, %s10
        %p172 = scmp.lt.s32.totalorder %s171, 3
        %s173 = scalar_select %p172, %s171, 3
        %s174 = smul.addr %s173, 8
        %s175 = scalar_lea.vmem %s1, %s174
        %s176 = smul.u32 2, %s10
      $region24: #{chamfer_loss.1} parent=15 // pred_fallthru
        _
      // Predicated region
      $region25: #{chamfer_loss.1} parent=15 // pred_check
        %p177 = pneg %p82
      $region26: #{chamfer_loss.1} parent=15 // pred_check_branch
        %179 = sbr.rel (%p177) target = $region28
      $region27: #{chamfer_loss.1} parent=15 // pred_region
        %s180 = smul.u32 2, %s10
        %p181 = scmp.lt.s32.totalorder %s180, 3
        %s182 = scalar_select %p181, %s180, 3
        %s183 = smul.addr %s182, 8
        %s184 = scalar_lea.vmem %s2, %s183
        %s185 = smul.u32 2, %s10
      $region28: #{chamfer_loss.1} parent=15 // pred_fallthru
        _
      // Predicated region
      $region29: #{chamfer_loss.1} parent=15 // pred_check
        %p186 = pneg %p108
      $region30: #{chamfer_loss.1} parent=15 // pred_check_branch
        %188 = sbr.rel (%p186) target = $region32
      $region31: #{chamfer_loss.1} parent=15 // pred_region
        %s189 = smul.u32 2, %s10
        %p190 = scmp.lt.s32.totalorder %s189, 3
        %s191 = scalar_select %p190, %s189, 3
        %s192 = smul.addr %s191, 8
        %s193 = scalar_lea.vmem %s3, %s192
        %s194 = smul.u32 2, %s10
      $region32: #{chamfer_loss.1} parent=15 // pred_fallthru
        _
    $region16: #{chamfer_loss.1} parent=5 // pred_fallthru
      _
    %p195 = scmp.le.s32.totalorder 1, %s10
    %p196 = scmp.lt.s32.totalorder %s10, 3
    %p197 = pnand %p195, %p196
    %p198 = pneg %p197
    // Predicated region
    $region33: #{chamfer_loss.1} parent=5 // pred_check
      _
    $region34: #{chamfer_loss.1} parent=5 // pred_check_branch
      %200 = sbr.rel (%p197) target = $region36
    $region35: #{chamfer_loss.1} parent=5 // pred_region
      %s201 = ssub.s32 %s10, 1
      %s202 = smul.u32 2, %s15
      %p203 = scmp.lt.s32.totalorder %s202, 3
      %s204 = scalar_select %p203, %s202, 3
      %s205 = smul.addr %s204, 8
      %s206 = scalar_lea.vmem %s0, %s205
      %p207 = pneg %p36
      %p208 = pneg %p33
      %s209 = smul.u32 2, %s15
      %p210 = scmp.lt.s32.totalorder %s209, 3
      %s211 = scalar_select %p210, %s209, 3
      %s212 = smul.addr %s211, 8
      %s213 = scalar_lea.vmem %s1, %s212
      %p214 = pneg %p62
      %p215 = pneg %p59
      %s216 = smul.u32 2, %s15
      %p217 = scmp.lt.s32.totalorder %s216, 3
      %s218 = scalar_select %p217, %s216, 3
      %s219 = smul.addr %s218, 8
      %s220 = scalar_lea.vmem %s2, %s219
      %p221 = pneg %p88
      %p222 = pneg %p85
      %s223 = smul.u32 2, %s15
      %p224 = scmp.lt.s32.totalorder %s223, 3
      %s225 = scalar_select %p224, %s223, 3
      %s226 = smul.addr %s225, 8
      %s227 = scalar_lea.vmem %s3, %s226
      %p228 = pneg %p114
      %p229 = pneg %p111
      %p230 = pneg %p140
      %p231 = pneg %p137
      %p232 = scmp.lt.s32.totalorder %s15, 1
      %s233 = scalar_select %p232, %s15, 1
      %s234 = scalar_lea.vmem %s4, %s233
      %s235 = smul.u32 2, %s15
      %p236 = scmp.lt.s32.totalorder %s235, 3
      %s237 = scalar_select %p236, %s235, 3
      %s238 = smul.addr %s237, 8
      %s239 = scalar_lea.vmem %s0, %s238
      %s240 = smul.u32 2, %s15
      %s241 = smul.u32 2, %s15
      %p242 = scmp.lt.s32.totalorder %s241, 3
      %s243 = scalar_select %p242, %s241, 3
      %s244 = smul.addr %s243, 8
      %s245 = scalar_lea.vmem %s1, %s244
      %s246 = smul.u32 2, %s15
      %s247 = smul.u32 2, %s15
      %p248 = scmp.lt.s32.totalorder %s247, 3
      %s249 = scalar_select %p248, %s247, 3
      %s250 = smul.addr %s249, 8
      %s251 = scalar_lea.vmem %s2, %s250
      %s252 = smul.u32 2, %s15
      %s253 = smul.u32 2, %s15
      %p254 = scmp.lt.s32.totalorder %s253, 3
      %s255 = scalar_select %p254, %s253, 3
      %s256 = smul.addr %s255, 8
      %s257 = scalar_lea.vmem %s3, %s256
      %s258 = smul.u32 2, %s15
      %p259 = scmp.lt.s32.totalorder %s15, 1
      %s260 = scalar_select %p259, %s15, 1
      %s261 = scalar_lea.vmem %s4, %s260
      %v262 = vld [vmem:[%s239] sm:$0xff]
      %v263 = vld [vmem:[%s245] sm:$0xff]
      %v264 = vld [vmem:[%s251] sm:$0xff]
      %v265 = vld [vmem:[%s257] sm:$0xff]
      %266 = vxpose.xlu0.b32.start [1/16] %v265, 128
      %267 = vxpose.xlu0.b32.cont [2/16] 0.0, 128
      %268 = vxpose.xlu0.b32.cont [3/16] 0.0, 128
      %269 = vxpose.xlu0.b32.cont [4/16] 0.0, 128
      %270 = vxpose.xlu0.b32.cont [5/16] 0.0, 128
      %271 = vxpose.xlu0.b32.cont [6/16] 0.0, 128
      %272 = vxpose.xlu0.b32.cont [7/16] 0.0, 128
      %273 = vxpose.xlu0.b32.cont [8/16] 0.0, 128
      %274 = vxpose.xlu0.b32.cont [9/16] 0.0, 128
      %275 = vxpose.xlu0.b32.cont [10/16] 0.0, 128
      %276 = vxpose.xlu0.b32.cont [11/16] 0.0, 128
      %277 = vxpose.xlu0.b32.cont [12/16] 0.0, 128
      %278 = vxpose.xlu0.b32.cont [13/16] 0.0, 128
      %279 = vxpose.xlu0.b32.cont [14/16] 0.0, 128
      %280 = vxpose.xlu0.b32.cont [15/16] 0.0, 128
      %281 = vxpose.xlu0.b32.end [16/16] 0.0, 128
      %v282 = vpop.trf.xlu0
      %v283 = vpop.trf.xlu0
      %v284 = vpop.trf.xlu0
      %v285 = vpop.trf.xlu0
      %v286 = vpop.trf.xlu0
      %v287 = vpop.trf.xlu0
      %v288 = vpop.trf.xlu0
      %v289 = vpop.trf.xlu0
      %v290 = vpop.trf.xlu0
      %v291 = vpop.trf.xlu0
      %v292 = vpop.trf.xlu0
      %v293 = vpop.trf.xlu0
      %v294 = vpop.trf.xlu0
      %v295 = vpop.trf.xlu0
      %v296 = vpop.trf.xlu0
      %v297 = vpop.trf.xlu0
      %vm298 = vcmask 64512
      %v300 = vsel %vm298, %v282, 0
      %v303 = vsel %vm298, %v283, 0
      %v306 = vsel %vm298, %v284, 0
      %v309 = vsel %vm298, %v285, 0
      %v312 = vsel %vm298, %v286, 0
      %v315 = vsel %vm298, %v287, 0
      %v318 = vsel %vm298, %v288, 0
      %v321 = vsel %vm298, %v289, 0
      %v324 = vsel %vm298, %v290, 0
      %v327 = vsel %vm298, %v291, 0
      %v330 = vsel %vm298, %v292, 0
      %v333 = vsel %vm298, %v293, 0
      %v336 = vsel %vm298, %v294, 0
      %v339 = vsel %vm298, %v295, 0
      %v342 = vsel %vm298, %v296, 0
      %v345 = vsel %vm298, %v297, 0
      %347 = vmatprep.subr.mxu0 0.0
      %348 = vmatpush1.msra.mxu0 0.0
      %349 = vmatprep.subr.mxu0 0.0
      %350 = vmatpush1.msra.mxu0 0.0
      %351 = vmatprep.subr.mxu0 0.0
      %352 = vmatpush1.msra.mxu0 0.0
      %353 = vmatprep.subr.mxu0 0.0
      %354 = vmatpush1.msra.mxu0 0.0
      %355 = vmatprep.subr.mxu0 0.0
      %356 = vmatpush1.msra.mxu0 0.0
      %357 = vmatprep.subr.mxu0 0.0
      %358 = vmatpush1.msra.mxu0 0.0
      %359 = vmatprep.subr.mxu0 0.0
      %360 = vmatpush1.msra.mxu0 0.0
      %361 = vmatprep.subr.mxu0 0.0
      %362 = vmatpush1.msra.mxu0 0.0
      %363 = vmatprep.subr.mxu0 0.0
      %364 = vmatpush1.msra.mxu0 0.0
      %365 = vmatprep.subr.mxu0 0.0
      %366 = vmatpush1.msra.mxu0 0.0
      %367 = vmatprep.subr.mxu0 0.0
      %368 = vmatpush1.msra.mxu0 0.0
      %369 = vmatprep.subr.mxu0 0.0
      %370 = vmatpush1.msra.mxu0 0.0
      %371 = vmatprep.subr.mxu0 0.0
      %372 = vmatpush1.msra.mxu0 0.0
      %373 = vmatprep.subr.mxu0 0.0
      %374 = vmatpush1.msra.mxu0 0.0
      %375 = vmatprep.subr.mxu0 0.0
      %376 = vmatpush1.msra.mxu0 0.0
      %377 = vmatprep.subr.mxu0 0.0
      %378 = vmatpush1.msra.mxu0 %v262
      %379 = vmatprep.subr.mxu0 0.0
      %380 = vmatpush2.msra.mxu0 0.0
      %381 = vmatprep.subr.mxu0 0.0
      %382 = vmatpush2.msra.mxu0 0.0
      %383 = vmatprep.subr.mxu0 0.0
      %384 = vmatpush2.msra.mxu0 0.0
      %385 = vmatprep.subr.mxu0 0.0
      %386 = vmatpush2.msra.mxu0 0.0
      %387 = vmatprep.subr.mxu0 0.0
      %388 = vmatpush2.msra.mxu0 0.0
      %389 = vmatprep.subr.mxu0 0.0
      %390 = vmatpush2.msra.mxu0 0.0
      %391 = vmatprep.subr.mxu0 0.0
      %392 = vmatpush2.msra.mxu0 0.0
      %393 = vmatprep.subr.mxu0 0.0
      %394 = vmatpush2.msra.mxu0 0.0
      %395 = vmatprep.subr.mxu0 0.0
      %396 = vmatpush2.msra.mxu0 0.0
      %397 = vmatprep.subr.mxu0 0.0
      %398 = vmatpush2.msra.mxu0 0.0
      %399 = vmatprep.subr.mxu0 0.0
      %400 = vmatpush2.msra.mxu0 0.0
      %401 = vmatprep.subr.mxu0 0.0
      %402 = vmatpush2.msra.mxu0 0.0
      %403 = vmatprep.subr.mxu0 0.0
      %404 = vmatpush2.msra.mxu0 0.0
      %405 = vmatprep.subr.mxu0 0.0
      %406 = vmatpush2.msra.mxu0 0.0
      %407 = vmatprep.subr.mxu0 0.0
      %408 = vmatpush2.msra.mxu0 0.0
      %409 = vmatprep.subr.mxu0 0.0
      %410 = vmatpush2.msra.mxu0 0.0
      %411 = vmatprep.mubr.f32.mxu0 0.0
      %412 = vmatmul.mubr.f32.gmra.mxu0 %v300
      %v413 = vpop.f32.mrf.mxu0
      %v414 = vadd.f32 0.0, %v413
      %v415 = vpop.f32.mrf.mxu0
      %416 = vmatprep.mubr.f32.mxu0 0.0
      %417 = vmatmul.mubr.f32.gmra.mxu0 %v303
      %v418 = vpop.f32.mrf.mxu0
      %v419 = vadd.f32 0.0, %v418
      %v420 = vpop.f32.mrf.mxu0
      %421 = vmatprep.mubr.f32.mxu0 0.0
      %422 = vmatmul.mubr.f32.gmra.mxu0 %v306
      %v423 = vpop.f32.mrf.mxu0
      %v424 = vadd.f32 0.0, %v423
      %v425 = vpop.f32.mrf.mxu0
      %426 = vmatprep.mubr.f32.mxu0 0.0
      %427 = vmatmul.mubr.f32.gmra.mxu0 %v309
      %v428 = vpop.f32.mrf.mxu0
      %v429 = vadd.f32 0.0, %v428
      %v430 = vpop.f32.mrf.mxu0
      %431 = vmatprep.mubr.f32.mxu0 0.0
      %432 = vmatmul.mubr.f32.gmra.mxu0 %v312
      %v433 = vpop.f32.mrf.mxu0
      %v434 = vadd.f32 0.0, %v433
      %v435 = vpop.f32.mrf.mxu0
      %436 = vmatprep.mubr.f32.mxu0 0.0
      %437 = vmatmul.mubr.f32.gmra.mxu0 %v315
      %v438 = vpop.f32.mrf.mxu0
      %v439 = vadd.f32 0.0, %v438
      %v440 = vpop.f32.mrf.mxu0
      %441 = vmatprep.mubr.f32.mxu0 0.0
      %442 = vmatmul.mubr.f32.gmra.mxu0 %v318
      %v443 = vpop.f32.mrf.mxu0
      %v444 = vadd.f32 0.0, %v443
      %v445 = vpop.f32.mrf.mxu0
      %446 = vmatprep.mubr.f32.mxu0 0.0
      %447 = vmatmul.mubr.f32.gmra.mxu0 %v321
      %v448 = vpop.f32.mrf.mxu0
      %v449 = vadd.f32 0.0, %v448
      %v450 = vpop.f32.mrf.mxu0
      %451 = vmatprep.mubr.f32.mxu0 0.0
      %452 = vmatmul.mubr.f32.gmra.mxu0 %v324
      %v453 = vpop.f32.mrf.mxu0
      %v454 = vadd.f32 0.0, %v453
      %v455 = vpop.f32.mrf.mxu0
      %456 = vmatprep.mubr.f32.mxu0 0.0
      %457 = vmatmul.mubr.f32.gmra.mxu0 %v327
      %v458 = vpop.f32.mrf.mxu0
      %v459 = vadd.f32 0.0, %v458
      %v460 = vpop.f32.mrf.mxu0
      %461 = vmatprep.mubr.f32.mxu0 0.0
      %462 = vmatmul.mubr.f32.gmra.mxu0 %v330
      %v463 = vpop.f32.mrf.mxu0
      %v464 = vadd.f32 0.0, %v463
      %v465 = vpop.f32.mrf.mxu0
      %466 = vmatprep.mubr.f32.mxu0 0.0
      %467 = vmatmul.mubr.f32.gmra.mxu0 %v333
      %v468 = vpop.f32.mrf.mxu0
      %v469 = vadd.f32 0.0, %v468
      %v470 = vpop.f32.mrf.mxu0
      %471 = vmatprep.mubr.f32.mxu0 0.0
      %472 = vmatmul.mubr.f32.gmra.mxu0 %v336
      %v473 = vpop.f32.mrf.mxu0
      %v474 = vadd.f32 0.0, %v473
      %v475 = vpop.f32.mrf.mxu0
      %476 = vmatprep.mubr.f32.mxu0 0.0
      %477 = vmatmul.mubr.f32.gmra.mxu0 %v339
      %v478 = vpop.f32.mrf.mxu0
      %v479 = vadd.f32 0.0, %v478
      %v480 = vpop.f32.mrf.mxu0
      %481 = vmatprep.mubr.f32.mxu0 0.0
      %482 = vmatmul.mubr.f32.gmra.mxu0 %v342
      %v483 = vpop.f32.mrf.mxu0
      %v484 = vadd.f32 0.0, %v483
      %v485 = vpop.f32.mrf.mxu0
      %486 = vmatprep.mubr.f32.mxu0 0.0
      %487 = vmatmul.mubr.f32.gmra.mxu0 %v345
      %v488 = vpop.f32.mrf.mxu0
      %v489 = vadd.f32 0.0, %v488
      %v490 = vpop.f32.mrf.mxu0
      %491 = vdwg.mxu0
      %492 = vxpose.xlu0.b32.start [1/16] %v263, 128
      %493 = vxpose.xlu0.b32.cont [2/16] 0.0, 128
      %494 = vxpose.xlu0.b32.cont [3/16] 0.0, 128
      %495 = vxpose.xlu0.b32.cont [4/16] 0.0, 128
      %496 = vxpose.xlu0.b32.cont [5/16] 0.0, 128
      %497 = vxpose.xlu0.b32.cont [6/16] 0.0, 128
      %498 = vxpose.xlu0.b32.cont [7/16] 0.0, 128
      %499 = vxpose.xlu0.b32.cont [8/16] 0.0, 128
      %500 = vxpose.xlu0.b32.cont [9/16] 0.0, 128
      %501 = vxpose.xlu0.b32.cont [10/16] 0.0, 128
      %502 = vxpose.xlu0.b32.cont [11/16] 0.0, 128
      %503 = vxpose.xlu0.b32.cont [12/16] 0.0, 128
      %504 = vxpose.xlu0.b32.cont [13/16] 0.0, 128
      %505 = vxpose.xlu0.b32.cont [14/16] 0.0, 128
      %506 = vxpose.xlu0.b32.cont [15/16] 0.0, 128
      %507 = vxpose.xlu0.b32.end [16/16] 0.0, 128
      %v508 = vpop.trf.xlu0
      %v509 = vpop.trf.xlu0
      %v510 = vpop.trf.xlu0
      %v511 = vpop.trf.xlu0
      %v512 = vpop.trf.xlu0
      %v513 = vpop.trf.xlu0
      %v514 = vpop.trf.xlu0
      %v515 = vpop.trf.xlu0
      %v516 = vpop.trf.xlu0
      %v517 = vpop.trf.xlu0
      %v518 = vpop.trf.xlu0
      %v519 = vpop.trf.xlu0
      %v520 = vpop.trf.xlu0
      %v521 = vpop.trf.xlu0
      %v522 = vpop.trf.xlu0
      %v523 = vpop.trf.xlu0
      %v525 = vsel %vm298, %v508, 0
      %v528 = vsel %vm298, %v509, 0
      %v531 = vsel %vm298, %v510, 0
      %v534 = vsel %vm298, %v511, 0
      %v537 = vsel %vm298, %v512, 0
      %v540 = vsel %vm298, %v513, 0
      %v543 = vsel %vm298, %v514, 0
      %v546 = vsel %vm298, %v515, 0
      %v549 = vsel %vm298, %v516, 0
      %v552 = vsel %vm298, %v517, 0
      %v555 = vsel %vm298, %v518, 0
      %v558 = vsel %vm298, %v519, 0
      %v561 = vsel %vm298, %v520, 0
      %v564 = vsel %vm298, %v521, 0
      %v567 = vsel %vm298, %v522, 0
      %v570 = vsel %vm298, %v523, 0
      %572 = vmatprep.subr.mxu0 0.0
      %573 = vmatpush1.msra.mxu0 0.0
      %574 = vmatprep.subr.mxu0 0.0
      %575 = vmatpush1.msra.mxu0 0.0
      %576 = vmatprep.subr.mxu0 0.0
      %577 = vmatpush1.msra.mxu0 0.0
      %578 = vmatprep.subr.mxu0 0.0
      %579 = vmatpush1.msra.mxu0 0.0
      %580 = vmatprep.subr.mxu0 0.0
      %581 = vmatpush1.msra.mxu0 0.0
      %582 = vmatprep.subr.mxu0 0.0
      %583 = vmatpush1.msra.mxu0 0.0
      %584 = vmatprep.subr.mxu0 0.0
      %585 = vmatpush1.msra.mxu0 0.0
      %586 = vmatprep.subr.mxu0 0.0
      %587 = vmatpush1.msra.mxu0 0.0
      %588 = vmatprep.subr.mxu0 0.0
      %589 = vmatpush1.msra.mxu0 0.0
      %590 = vmatprep.subr.mxu0 0.0
      %591 = vmatpush1.msra.mxu0 0.0
      %592 = vmatprep.subr.mxu0 0.0
      %593 = vmatpush1.msra.mxu0 0.0
      %594 = vmatprep.subr.mxu0 0.0
      %595 = vmatpush1.msra.mxu0 0.0
      %596 = vmatprep.subr.mxu0 0.0
      %597 = vmatpush1.msra.mxu0 0.0
      %598 = vmatprep.subr.mxu0 0.0
      %599 = vmatpush1.msra.mxu0 0.0
      %600 = vmatprep.subr.mxu0 0.0
      %601 = vmatpush1.msra.mxu0 0.0
      %602 = vmatprep.subr.mxu0 0.0
      %603 = vmatpush1.msra.mxu0 %v264
      %604 = vmatprep.subr.mxu0 0.0
      %605 = vmatpush2.msra.mxu0 0.0
      %606 = vmatprep.subr.mxu0 0.0
      %607 = vmatpush2.msra.mxu0 0.0
      %608 = vmatprep.subr.mxu0 0.0
      %609 = vmatpush2.msra.mxu0 0.0
      %610 = vmatprep.subr.mxu0 0.0
      %611 = vmatpush2.msra.mxu0 0.0
      %612 = vmatprep.subr.mxu0 0.0
      %613 = vmatpush2.msra.mxu0 0.0
      %614 = vmatprep.subr.mxu0 0.0
      %615 = vmatpush2.msra.mxu0 0.0
      %616 = vmatprep.subr.mxu0 0.0
      %617 = vmatpush2.msra.mxu0 0.0
      %618 = vmatprep.subr.mxu0 0.0
      %619 = vmatpush2.msra.mxu0 0.0
      %620 = vmatprep.subr.mxu0 0.0
      %621 = vmatpush2.msra.mxu0 0.0
      %622 = vmatprep.subr.mxu0 0.0
      %623 = vmatpush2.msra.mxu0 0.0
      %624 = vmatprep.subr.mxu0 0.0
      %625 = vmatpush2.msra.mxu0 0.0
      %626 = vmatprep.subr.mxu0 0.0
      %627 = vmatpush2.msra.mxu0 0.0
      %628 = vmatprep.subr.mxu0 0.0
      %629 = vmatpush2.msra.mxu0 0.0
      %630 = vmatprep.subr.mxu0 0.0
      %631 = vmatpush2.msra.mxu0 0.0
      %632 = vmatprep.subr.mxu0 0.0
      %633 = vmatpush2.msra.mxu0 0.0
      %634 = vmatprep.subr.mxu0 0.0
      %635 = vmatpush2.msra.mxu0 0.0
      %636 = vmatprep.mubr.f32.mxu0 0.0
      %637 = vmatmul.mubr.f32.gmra.mxu0 %v525
      %v638 = vpop.f32.mrf.mxu0
      %v639 = vadd.f32 0.0, %v638
      %v640 = vpop.f32.mrf.mxu0
      %641 = vmatprep.mubr.f32.mxu0 0.0
      %642 = vmatmul.mubr.f32.gmra.mxu0 %v528
      %v643 = vpop.f32.mrf.mxu0
      %v644 = vadd.f32 0.0, %v643
      %v645 = vpop.f32.mrf.mxu0
      %646 = vmatprep.mubr.f32.mxu0 0.0
      %647 = vmatmul.mubr.f32.gmra.mxu0 %v531
      %v648 = vpop.f32.mrf.mxu0
      %v649 = vadd.f32 0.0, %v648
      %v650 = vpop.f32.mrf.mxu0
      %651 = vmatprep.mubr.f32.mxu0 0.0
      %652 = vmatmul.mubr.f32.gmra.mxu0 %v534
      %v653 = vpop.f32.mrf.mxu0
      %v654 = vadd.f32 0.0, %v653
      %v655 = vpop.f32.mrf.mxu0
      %656 = vmatprep.mubr.f32.mxu0 0.0
      %657 = vmatmul.mubr.f32.gmra.mxu0 %v537
      %v658 = vpop.f32.mrf.mxu0
      %v659 = vadd.f32 0.0, %v658
      %v660 = vpop.f32.mrf.mxu0
      %661 = vmatprep.mubr.f32.mxu0 0.0
      %662 = vmatmul.mubr.f32.gmra.mxu0 %v540
      %v663 = vpop.f32.mrf.mxu0
      %v664 = vadd.f32 0.0, %v663
      %v665 = vpop.f32.mrf.mxu0
      %666 = vmatprep.mubr.f32.mxu0 0.0
      %667 = vmatmul.mubr.f32.gmra.mxu0 %v543
      %v668 = vpop.f32.mrf.mxu0
      %v669 = vadd.f32 0.0, %v668
      %v670 = vpop.f32.mrf.mxu0
      %671 = vmatprep.mubr.f32.mxu0 0.0
      %672 = vmatmul.mubr.f32.gmra.mxu0 %v546
      %v673 = vpop.f32.mrf.mxu0
      %v674 = vadd.f32 0.0, %v673
      %v675 = vpop.f32.mrf.mxu0
      %676 = vmatprep.mubr.f32.mxu0 0.0
      %677 = vmatmul.mubr.f32.gmra.mxu0 %v549
      %v678 = vpop.f32.mrf.mxu0
      %v679 = vadd.f32 0.0, %v678
      %v680 = vpop.f32.mrf.mxu0
      %681 = vmatprep.mubr.f32.mxu0 0.0
      %682 = vmatmul.mubr.f32.gmra.mxu0 %v552
      %v683 = vpop.f32.mrf.mxu0
      %v684 = vadd.f32 0.0, %v683
      %v685 = vpop.f32.mrf.mxu0
      %686 = vmatprep.mubr.f32.mxu0 0.0
      %687 = vmatmul.mubr.f32.gmra.mxu0 %v555
      %v688 = vpop.f32.mrf.mxu0
      %v689 = vadd.f32 0.0, %v688
      %v690 = vpop.f32.mrf.mxu0
      %691 = vmatprep.mubr.f32.mxu0 0.0
      %692 = vmatmul.mubr.f32.gmra.mxu0 %v558
      %v693 = vpop.f32.mrf.mxu0
      %v694 = vadd.f32 0.0, %v693
      %v695 = vpop.f32.mrf.mxu0
      %696 = vmatprep.mubr.f32.mxu0 0.0
      %697 = vmatmul.mubr.f32.gmra.mxu0 %v561
      %v698 = vpop.f32.mrf.mxu0
      %v699 = vadd.f32 0.0, %v698
      %v700 = vpop.f32.mrf.mxu0
      %701 = vmatprep.mubr.f32.mxu0 0.0
      %702 = vmatmul.mubr.f32.gmra.mxu0 %v564
      %v703 = vpop.f32.mrf.mxu0
      %v704 = vadd.f32 0.0, %v703
      %v705 = vpop.f32.mrf.mxu0
      %706 = vmatprep.mubr.f32.mxu0 0.0
      %707 = vmatmul.mubr.f32.gmra.mxu0 %v567
      %v708 = vpop.f32.mrf.mxu0
      %v709 = vadd.f32 0.0, %v708
      %v710 = vpop.f32.mrf.mxu0
      %711 = vmatprep.mubr.f32.mxu0 0.0
      %712 = vmatmul.mubr.f32.gmra.mxu0 %v570
      %v713 = vpop.f32.mrf.mxu0
      %v714 = vadd.f32 0.0, %v713
      %v715 = vpop.f32.mrf.mxu0
      %716 = vdwg.mxu0
      %v717 = vmin.f32 %v414, %v434
      %v718 = vmin.f32 %v419, %v439
      %v719 = vmin.f32 %v424, %v444
      %v720 = vmin.f32 %v429, %v449
      %v721 = vmin.f32 %v717, %v454
      %v722 = vmin.f32 %v718, %v459
      %v723 = vmin.f32 %v719, %v464
      %v724 = vmin.f32 %v720, %v469
      %v725 = vmin.f32 %v721, %v474
      %v726 = vmin.f32 %v722, %v479
      %v727 = vmin.f32 %v723, %v484
      %v728 = vmin.f32 %v724, %v489
      %v729 = vmin.f32 %v725, %v726
      %v730 = vmin.f32 %v727, %v728
      %v731 = vmin.f32 %v729, %v730
      %v732 = vrot.slane %v731, 4
      %v733 = vmin.f32 %v731, %v732
      %v734 = vrot.slane %v733, 2
      %v735 = vmin.f32 %v733, %v734
      %v736 = vrot.slane %v735, 1
      %v737 = vmin.f32 %v735, %v736
      %v738 = vmin.f32 %v639, %v659
      %v739 = vmin.f32 %v644, %v664
      %v740 = vmin.f32 %v649, %v669
      %v741 = vmin.f32 %v654, %v674
      %v742 = vmin.f32 %v738, %v679
      %v743 = vmin.f32 %v739, %v684
      %v744 = vmin.f32 %v740, %v689
      %v745 = vmin.f32 %v741, %v694
      %v746 = vmin.f32 %v742, %v699
      %v747 = vmin.f32 %v743, %v704
      %v748 = vmin.f32 %v744, %v709
      %v749 = vmin.f32 %v745, %v714
      %v750 = vmin.f32 %v746, %v747
      %v751 = vmin.f32 %v748, %v749
      %v752 = vmin.f32 %v750, %v751
      %v753 = vrot.slane %v752, 4
      %v754 = vmin.f32 %v752, %v753
      %v755 = vrot.slane %v754, 2
      %v756 = vmin.f32 %v754, %v755
      %v757 = vrot.slane %v756, 1
      %v758 = vmin.f32 %v756, %v757
      %v759 = vmax.f32 %v737, 0.0
      %v760 = vadd.f32 %v759, 1e-06
      %v761 = vrsqrt.pop %v760
      %v762 = vmul.f32 %v760, %v761
      %vm763 = vcmp.eq.f32.partialorder %v760, inf
      %v764 = vsel %vm763, %v760, %v762
      %vm765 = vcmp.eq.f32.partialorder %v760, 0.0
      %v766 = vand.u32 %v760, 2147483648
      %v767 = vsel %vm765, %v766, %v764
      %v768 = vmax.f32 %v758, 0.0
      %v769 = vadd.f32 %v768, 1e-06
      %v770 = vrsqrt.pop %v769
      %v771 = vmul.f32 %v769, %v770
      %vm772 = vcmp.eq.f32.partialorder %v769, inf
      %v773 = vsel %vm772, %v769, %v771
      %vm774 = vcmp.eq.f32.partialorder %v769, 0.0
      %v775 = vand.u32 %v769, 2147483648
      %v776 = vsel %vm774, %v775, %v773
      %v777 = vadd.f32 %v767, %v776
      %v778 = vadd.f32 %v777, 0.0
      %s779 = scalar_lea.vmem %s239, 8
      %v780 = vld [vmem:[%s779] sm:$0xff]
      %s781 = scalar_lea.vmem %s245, 8
      %v782 = vld [vmem:[%s781] sm:$0xff]
      %s783 = scalar_lea.vmem %s251, 8
      %v784 = vld [vmem:[%s783] sm:$0xff]
      %s785 = scalar_lea.vmem %s257, 8
      %v786 = vld [vmem:[%s785] sm:$0xff]
      %787 = vxpose.xlu0.b32.start [1/16] %v786, 128
      %788 = vxpose.xlu0.b32.cont [2/16] 0.0, 128
      %789 = vxpose.xlu0.b32.cont [3/16] 0.0, 128
      %790 = vxpose.xlu0.b32.cont [4/16] 0.0, 128
      %791 = vxpose.xlu0.b32.cont [5/16] 0.0, 128
      %792 = vxpose.xlu0.b32.cont [6/16] 0.0, 128
      %793 = vxpose.xlu0.b32.cont [7/16] 0.0, 128
      %794 = vxpose.xlu0.b32.cont [8/16] 0.0, 128
      %795 = vxpose.xlu0.b32.cont [9/16] 0.0, 128
      %796 = vxpose.xlu0.b32.cont [10/16] 0.0, 128
      %797 = vxpose.xlu0.b32.cont [11/16] 0.0, 128
      %798 = vxpose.xlu0.b32.cont [12/16] 0.0, 128
      %799 = vxpose.xlu0.b32.cont [13/16] 0.0, 128
      %800 = vxpose.xlu0.b32.cont [14/16] 0.0, 128
      %801 = vxpose.xlu0.b32.cont [15/16] 0.0, 128
      %802 = vxpose.xlu0.b32.end [16/16] 0.0, 128
      %v803 = vpop.trf.xlu0
      %v804 = vpop.trf.xlu0
      %v805 = vpop.trf.xlu0
      %v806 = vpop.trf.xlu0
      %v807 = vpop.trf.xlu0
      %v808 = vpop.trf.xlu0
      %v809 = vpop.trf.xlu0
      %v810 = vpop.trf.xlu0
      %v811 = vpop.trf.xlu0
      %v812 = vpop.trf.xlu0
      %v813 = vpop.trf.xlu0
      %v814 = vpop.trf.xlu0
      %v815 = vpop.trf.xlu0
      %v816 = vpop.trf.xlu0
      %v817 = vpop.trf.xlu0
      %v818 = vpop.trf.xlu0
      %v820 = vsel %vm298, %v803, 0
      %v823 = vsel %vm298, %v804, 0
      %v826 = vsel %vm298, %v805, 0
      %v829 = vsel %vm298, %v806, 0
      %v832 = vsel %vm298, %v807, 0
      %v835 = vsel %vm298, %v808, 0
      %v838 = vsel %vm298, %v809, 0
      %v841 = vsel %vm298, %v810, 0
      %v844 = vsel %vm298, %v811, 0
      %v847 = vsel %vm298, %v812, 0
      %v850 = vsel %vm298, %v813, 0
      %v853 = vsel %vm298, %v814, 0
      %v856 = vsel %vm298, %v815, 0
      %v859 = vsel %vm298, %v816, 0
      %v862 = vsel %vm298, %v817, 0
      %v865 = vsel %vm298, %v818, 0
      %867 = vmatprep.subr.mxu0 0.0
      %868 = vmatpush1.msra.mxu0 0.0
      %869 = vmatprep.subr.mxu0 0.0
      %870 = vmatpush1.msra.mxu0 0.0
      %871 = vmatprep.subr.mxu0 0.0
      %872 = vmatpush1.msra.mxu0 0.0
      %873 = vmatprep.subr.mxu0 0.0
      %874 = vmatpush1.msra.mxu0 0.0
      %875 = vmatprep.subr.mxu0 0.0
      %876 = vmatpush1.msra.mxu0 0.0
      %877 = vmatprep.subr.mxu0 0.0
      %878 = vmatpush1.msra.mxu0 0.0
      %879 = vmatprep.subr.mxu0 0.0
      %880 = vmatpush1.msra.mxu0 0.0
      %881 = vmatprep.subr.mxu0 0.0
      %882 = vmatpush1.msra.mxu0 0.0
      %883 = vmatprep.subr.mxu0 0.0
      %884 = vmatpush1.msra.mxu0 0.0
      %885 = vmatprep.subr.mxu0 0.0
      %886 = vmatpush1.msra.mxu0 0.0
      %887 = vmatprep.subr.mxu0 0.0
      %888 = vmatpush1.msra.mxu0 0.0
      %889 = vmatprep.subr.mxu0 0.0
      %890 = vmatpush1.msra.mxu0 0.0
      %891 = vmatprep.subr.mxu0 0.0
      %892 = vmatpush1.msra.mxu0 0.0
      %893 = vmatprep.subr.mxu0 0.0
      %894 = vmatpush1.msra.mxu0 0.0
      %895 = vmatprep.subr.mxu0 0.0
      %896 = vmatpush1.msra.mxu0 0.0
      %897 = vmatprep.subr.mxu0 0.0
      %898 = vmatpush1.msra.mxu0 %v780
      %899 = vmatprep.subr.mxu0 0.0
      %900 = vmatpush2.msra.mxu0 0.0
      %901 = vmatprep.subr.mxu0 0.0
      %902 = vmatpush2.msra.mxu0 0.0
      %903 = vmatprep.subr.mxu0 0.0
      %904 = vmatpush2.msra.mxu0 0.0
      %905 = vmatprep.subr.mxu0 0.0
      %906 = vmatpush2.msra.mxu0 0.0
      %907 = vmatprep.subr.mxu0 0.0
      %908 = vmatpush2.msra.mxu0 0.0
      %909 = vmatprep.subr.mxu0 0.0
      %910 = vmatpush2.msra.mxu0 0.0
      %911 = vmatprep.subr.mxu0 0.0
      %912 = vmatpush2.msra.mxu0 0.0
      %913 = vmatprep.subr.mxu0 0.0
      %914 = vmatpush2.msra.mxu0 0.0
      %915 = vmatprep.subr.mxu0 0.0
      %916 = vmatpush2.msra.mxu0 0.0
      %917 = vmatprep.subr.mxu0 0.0
      %918 = vmatpush2.msra.mxu0 0.0
      %919 = vmatprep.subr.mxu0 0.0
      %920 = vmatpush2.msra.mxu0 0.0
      %921 = vmatprep.subr.mxu0 0.0
      %922 = vmatpush2.msra.mxu0 0.0
      %923 = vmatprep.subr.mxu0 0.0
      %924 = vmatpush2.msra.mxu0 0.0
      %925 = vmatprep.subr.mxu0 0.0
      %926 = vmatpush2.msra.mxu0 0.0
      %927 = vmatprep.subr.mxu0 0.0
      %928 = vmatpush2.msra.mxu0 0.0
      %929 = vmatprep.subr.mxu0 0.0
      %930 = vmatpush2.msra.mxu0 0.0
      %931 = vmatprep.mubr.f32.mxu0 0.0
      %932 = vmatmul.mubr.f32.gmra.mxu0 %v820
      %v933 = vpop.f32.mrf.mxu0
      %v934 = vadd.f32 0.0, %v933
      %v935 = vpop.f32.mrf.mxu0
      %936 = vmatprep.mubr.f32.mxu0 0.0
      %937 = vmatmul.mubr.f32.gmra.mxu0 %v823
      %v938 = vpop.f32.mrf.mxu0
      %v939 = vadd.f32 0.0, %v938
      %v940 = vpop.f32.mrf.mxu0
      %941 = vmatprep.mubr.f32.mxu0 0.0
      %942 = vmatmul.mubr.f32.gmra.mxu0 %v826
      %v943 = vpop.f32.mrf.mxu0
      %v944 = vadd.f32 0.0, %v943
      %v945 = vpop.f32.mrf.mxu0
      %946 = vmatprep.mubr.f32.mxu0 0.0
      %947 = vmatmul.mubr.f32.gmra.mxu0 %v829
      %v948 = vpop.f32.mrf.mxu0
      %v949 = vadd.f32 0.0, %v948
      %v950 = vpop.f32.mrf.mxu0
      %951 = vmatprep.mubr.f32.mxu0 0.0
      %952 = vmatmul.mubr.f32.gmra.mxu0 %v832
      %v953 = vpop.f32.mrf.mxu0
      %v954 = vadd.f32 0.0, %v953
      %v955 = vpop.f32.mrf.mxu0
      %956 = vmatprep.mubr.f32.mxu0 0.0
      %957 = vmatmul.mubr.f32.gmra.mxu0 %v835
      %v958 = vpop.f32.mrf.mxu0
      %v959 = vadd.f32 0.0, %v958
      %v960 = vpop.f32.mrf.mxu0
      %961 = vmatprep.mubr.f32.mxu0 0.0
      %962 = vmatmul.mubr.f32.gmra.mxu0 %v838
      %v963 = vpop.f32.mrf.mxu0
      %v964 = vadd.f32 0.0, %v963
      %v965 = vpop.f32.mrf.mxu0
      %966 = vmatprep.mubr.f32.mxu0 0.0
      %967 = vmatmul.mubr.f32.gmra.mxu0 %v841
      %v968 = vpop.f32.mrf.mxu0
      %v969 = vadd.f32 0.0, %v968
      %v970 = vpop.f32.mrf.mxu0
      %971 = vmatprep.mubr.f32.mxu0 0.0
      %972 = vmatmul.mubr.f32.gmra.mxu0 %v844
      %v973 = vpop.f32.mrf.mxu0
      %v974 = vadd.f32 0.0, %v973
      %v975 = vpop.f32.mrf.mxu0
      %976 = vmatprep.mubr.f32.mxu0 0.0
      %977 = vmatmul.mubr.f32.gmra.mxu0 %v847
      %v978 = vpop.f32.mrf.mxu0
      %v979 = vadd.f32 0.0, %v978
      %v980 = vpop.f32.mrf.mxu0
      %981 = vmatprep.mubr.f32.mxu0 0.0
      %982 = vmatmul.mubr.f32.gmra.mxu0 %v850
      %v983 = vpop.f32.mrf.mxu0
      %v984 = vadd.f32 0.0, %v983
      %v985 = vpop.f32.mrf.mxu0
      %986 = vmatprep.mubr.f32.mxu0 0.0
      %987 = vmatmul.mubr.f32.gmra.mxu0 %v853
      %v988 = vpop.f32.mrf.mxu0
      %v989 = vadd.f32 0.0, %v988
      %v990 = vpop.f32.mrf.mxu0
      %991 = vmatprep.mubr.f32.mxu0 0.0
      %992 = vmatmul.mubr.f32.gmra.mxu0 %v856
      %v993 = vpop.f32.mrf.mxu0
      %v994 = vadd.f32 0.0, %v993
      %v995 = vpop.f32.mrf.mxu0
      %996 = vmatprep.mubr.f32.mxu0 0.0
      %997 = vmatmul.mubr.f32.gmra.mxu0 %v859
      %v998 = vpop.f32.mrf.mxu0
      %v999 = vadd.f32 0.0, %v998
      %v1000 = vpop.f32.mrf.mxu0
      %1001 = vmatprep.mubr.f32.mxu0 0.0
      %1002 = vmatmul.mubr.f32.gmra.mxu0 %v862
      %v1003 = vpop.f32.mrf.mxu0
      %v1004 = vadd.f32 0.0, %v1003
      %v1005 = vpop.f32.mrf.mxu0
      %1006 = vmatprep.mubr.f32.mxu0 0.0
      %1007 = vmatmul.mubr.f32.gmra.mxu0 %v865
      %v1008 = vpop.f32.mrf.mxu0
      %v1009 = vadd.f32 0.0, %v1008
      %v1010 = vpop.f32.mrf.mxu0
      %1011 = vdwg.mxu0
      %1012 = vxpose.xlu0.b32.start [1/16] %v782, 128
      %1013 = vxpose.xlu0.b32.cont [2/16] 0.0, 128
      %1014 = vxpose.xlu0.b32.cont [3/16] 0.0, 128
      %1015 = vxpose.xlu0.b32.cont [4/16] 0.0, 128
      %1016 = vxpose.xlu0.b32.cont [5/16] 0.0, 128
      %1017 = vxpose.xlu0.b32.cont [6/16] 0.0, 128
      %1018 = vxpose.xlu0.b32.cont [7/16] 0.0, 128
      %1019 = vxpose.xlu0.b32.cont [8/16] 0.0, 128
      %1020 = vxpose.xlu0.b32.cont [9/16] 0.0, 128
      %1021 = vxpose.xlu0.b32.cont [10/16] 0.0, 128
      %1022 = vxpose.xlu0.b32.cont [11/16] 0.0, 128
      %1023 = vxpose.xlu0.b32.cont [12/16] 0.0, 128
      %1024 = vxpose.xlu0.b32.cont [13/16] 0.0, 128
      %1025 = vxpose.xlu0.b32.cont [14/16] 0.0, 128
      %1026 = vxpose.xlu0.b32.cont [15/16] 0.0, 128
      %1027 = vxpose.xlu0.b32.end [16/16] 0.0, 128
      %v1028 = vpop.trf.xlu0
      %v1029 = vpop.trf.xlu0
      %v1030 = vpop.trf.xlu0
      %v1031 = vpop.trf.xlu0
      %v1032 = vpop.trf.xlu0
      %v1033 = vpop.trf.xlu0
      %v1034 = vpop.trf.xlu0
      %v1035 = vpop.trf.xlu0
      %v1036 = vpop.trf.xlu0
      %v1037 = vpop.trf.xlu0
      %v1038 = vpop.trf.xlu0
      %v1039 = vpop.trf.xlu0
      %v1040 = vpop.trf.xlu0
      %v1041 = vpop.trf.xlu0
      %v1042 = vpop.trf.xlu0
      %v1043 = vpop.trf.xlu0
      %v1045 = vsel %vm298, %v1028, 0
      %v1048 = vsel %vm298, %v1029, 0
      %v1051 = vsel %vm298, %v1030, 0
      %v1054 = vsel %vm298, %v1031, 0
      %v1057 = vsel %vm298, %v1032, 0
      %v1060 = vsel %vm298, %v1033, 0
      %v1063 = vsel %vm298, %v1034, 0
      %v1066 = vsel %vm298, %v1035, 0
      %v1069 = vsel %vm298, %v1036, 0
      %v1072 = vsel %vm298, %v1037, 0
      %v1075 = vsel %vm298, %v1038, 0
      %v1078 = vsel %vm298, %v1039, 0
      %v1081 = vsel %vm298, %v1040, 0
      %v1084 = vsel %vm298, %v1041, 0
      %v1087 = vsel %vm298, %v1042, 0
      %v1090 = vsel %vm298, %v1043, 0
      %1092 = vmatprep.subr.mxu0 0.0
      %1093 = vmatpush1.msra.mxu0 0.0
      %1094 = vmatprep.subr.mxu0 0.0
      %1095 = vmatpush1.msra.mxu0 0.0
      %1096 = vmatprep.subr.mxu0 0.0
      %1097 = vmatpush1.msra.mxu0 0.0
      %1098 = vmatprep.subr.mxu0 0.0
      %1099 = vmatpush1.msra.mxu0 0.0
      %1100 = vmatprep.subr.mxu0 0.0
      %1101 = vmatpush1.msra.mxu0 0.0
      %1102 = vmatprep.subr.mxu0 0.0
      %1103 = vmatpush1.msra.mxu0 0.0
      %1104 = vmatprep.subr.mxu0 0.0
      %1105 = vmatpush1.msra.mxu0 0.0
      %1106 = vmatprep.subr.mxu0 0.0
      %1107 = vmatpush1.msra.mxu0 0.0
      %1108 = vmatprep.subr.mxu0 0.0
      %1109 = vmatpush1.msra.mxu0 0.0
      %1110 = vmatprep.subr.mxu0 0.0
      %1111 = vmatpush1.msra.mxu0 0.0
      %1112 = vmatprep.subr.mxu0 0.0
      %1113 = vmatpush1.msra.mxu0 0.0
      %1114 = vmatprep.subr.mxu0 0.0
      %1115 = vmatpush1.msra.mxu0 0.0
      %1116 = vmatprep.subr.mxu0 0.0
      %1117 = vmatpush1.msra.mxu0 0.0
      %1118 = vmatprep.subr.mxu0 0.0
      %1119 = vmatpush1.msra.mxu0 0.0
      %1120 = vmatprep.subr.mxu0 0.0
      %1121 = vmatpush1.msra.mxu0 0.0
      %1122 = vmatprep.subr.mxu0 0.0
      %1123 = vmatpush1.msra.mxu0 %v784
      %1124 = vmatprep.subr.mxu0 0.0
      %1125 = vmatpush2.msra.mxu0 0.0
      %1126 = vmatprep.subr.mxu0 0.0
      %1127 = vmatpush2.msra.mxu0 0.0
      %1128 = vmatprep.subr.mxu0 0.0
      %1129 = vmatpush2.msra.mxu0 0.0
      %1130 = vmatprep.subr.mxu0 0.0
      %1131 = vmatpush2.msra.mxu0 0.0
      %1132 = vmatprep.subr.mxu0 0.0
      %1133 = vmatpush2.msra.mxu0 0.0
      %1134 = vmatprep.subr.mxu0 0.0
      %1135 = vmatpush2.msra.mxu0 0.0
      %1136 = vmatprep.subr.mxu0 0.0
      %1137 = vmatpush2.msra.mxu0 0.0
      %1138 = vmatprep.subr.mxu0 0.0
      %1139 = vmatpush2.msra.mxu0 0.0
      %1140 = vmatprep.subr.mxu0 0.0
      %1141 = vmatpush2.msra.mxu0 0.0
      %1142 = vmatprep.subr.mxu0 0.0
      %1143 = vmatpush2.msra.mxu0 0.0
      %1144 = vmatprep.subr.mxu0 0.0
      %1145 = vmatpush2.msra.mxu0 0.0
      %1146 = vmatprep.subr.mxu0 0.0
      %1147 = vmatpush2.msra.mxu0 0.0
      %1148 = vmatprep.subr.mxu0 0.0
      %1149 = vmatpush2.msra.mxu0 0.0
      %1150 = vmatprep.subr.mxu0 0.0
      %1151 = vmatpush2.msra.mxu0 0.0
      %1152 = vmatprep.subr.mxu0 0.0
      %1153 = vmatpush2.msra.mxu0 0.0
      %1154 = vmatprep.subr.mxu0 0.0
      %1155 = vmatpush2.msra.mxu0 0.0
      %1156 = vmatprep.mubr.f32.mxu0 0.0
      %1157 = vmatmul.mubr.f32.gmra.mxu0 %v1045
      %v1158 = vpop.f32.mrf.mxu0
      %v1159 = vadd.f32 0.0, %v1158
      %v1160 = vpop.f32.mrf.mxu0
      %1161 = vmatprep.mubr.f32.mxu0 0.0
      %1162 = vmatmul.mubr.f32.gmra.mxu0 %v1048
      %v1163 = vpop.f32.mrf.mxu0
      %v1164 = vadd.f32 0.0, %v1163
      %v1165 = vpop.f32.mrf.mxu0
      %1166 = vmatprep.mubr.f32.mxu0 0.0
      %1167 = vmatmul.mubr.f32.gmra.mxu0 %v1051
      %v1168 = vpop.f32.mrf.mxu0
      %v1169 = vadd.f32 0.0, %v1168
      %v1170 = vpop.f32.mrf.mxu0
      %1171 = vmatprep.mubr.f32.mxu0 0.0
      %1172 = vmatmul.mubr.f32.gmra.mxu0 %v1054
      %v1173 = vpop.f32.mrf.mxu0
      %v1174 = vadd.f32 0.0, %v1173
      %v1175 = vpop.f32.mrf.mxu0
      %1176 = vmatprep.mubr.f32.mxu0 0.0
      %1177 = vmatmul.mubr.f32.gmra.mxu0 %v1057
      %v1178 = vpop.f32.mrf.mxu0
      %v1179 = vadd.f32 0.0, %v1178
      %v1180 = vpop.f32.mrf.mxu0
      %1181 = vmatprep.mubr.f32.mxu0 0.0
      %1182 = vmatmul.mubr.f32.gmra.mxu0 %v1060
      %v1183 = vpop.f32.mrf.mxu0
      %v1184 = vadd.f32 0.0, %v1183
      %v1185 = vpop.f32.mrf.mxu0
      %1186 = vmatprep.mubr.f32.mxu0 0.0
      %1187 = vmatmul.mubr.f32.gmra.mxu0 %v1063
      %v1188 = vpop.f32.mrf.mxu0
      %v1189 = vadd.f32 0.0, %v1188
      %v1190 = vpop.f32.mrf.mxu0
      %1191 = vmatprep.mubr.f32.mxu0 0.0
      %1192 = vmatmul.mubr.f32.gmra.mxu0 %v1066
      %v1193 = vpop.f32.mrf.mxu0
      %v1194 = vadd.f32 0.0, %v1193
      %v1195 = vpop.f32.mrf.mxu0
      %1196 = vmatprep.mubr.f32.mxu0 0.0
      %1197 = vmatmul.mubr.f32.gmra.mxu0 %v1069
      %v1198 = vpop.f32.mrf.mxu0
      %v1199 = vadd.f32 0.0, %v1198
      %v1200 = vpop.f32.mrf.mxu0
      %1201 = vmatprep.mubr.f32.mxu0 0.0
      %1202 = vmatmul.mubr.f32.gmra.mxu0 %v1072
      %v1203 = vpop.f32.mrf.mxu0
      %v1204 = vadd.f32 0.0, %v1203
      %v1205 = vpop.f32.mrf.mxu0
      %1206 = vmatprep.mubr.f32.mxu0 0.0
      %1207 = vmatmul.mubr.f32.gmra.mxu0 %v1075
      %v1208 = vpop.f32.mrf.mxu0
      %v1209 = vadd.f32 0.0, %v1208
      %v1210 = vpop.f32.mrf.mxu0
      %1211 = vmatprep.mubr.f32.mxu0 0.0
      %1212 = vmatmul.mubr.f32.gmra.mxu0 %v1078
      %v1213 = vpop.f32.mrf.mxu0
      %v1214 = vadd.f32 0.0, %v1213
      %v1215 = vpop.f32.mrf.mxu0
      %1216 = vmatprep.mubr.f32.mxu0 0.0
      %1217 = vmatmul.mubr.f32.gmra.mxu0 %v1081
      %v1218 = vpop.f32.mrf.mxu0
      %v1219 = vadd.f32 0.0, %v1218
      %v1220 = vpop.f32.mrf.mxu0
      %1221 = vmatprep.mubr.f32.mxu0 0.0
      %1222 = vmatmul.mubr.f32.gmra.mxu0 %v1084
      %v1223 = vpop.f32.mrf.mxu0
      %v1224 = vadd.f32 0.0, %v1223
      %v1225 = vpop.f32.mrf.mxu0
      %1226 = vmatprep.mubr.f32.mxu0 0.0
      %1227 = vmatmul.mubr.f32.gmra.mxu0 %v1087
      %v1228 = vpop.f32.mrf.mxu0
      %v1229 = vadd.f32 0.0, %v1228
      %v1230 = vpop.f32.mrf.mxu0
      %1231 = vmatprep.mubr.f32.mxu0 0.0
      %1232 = vmatmul.mubr.f32.gmra.mxu0 %v1090
      %v1233 = vpop.f32.mrf.mxu0
      %v1234 = vadd.f32 0.0, %v1233
      %v1235 = vpop.f32.mrf.mxu0
      %1236 = vdwg.mxu0
      %v1237 = vmin.f32 %v934, %v954
      %v1238 = vmin.f32 %v939, %v959
      %v1239 = vmin.f32 %v944, %v964
      %v1240 = vmin.f32 %v949, %v969
      %v1241 = vmin.f32 %v1237, %v974
      %v1242 = vmin.f32 %v1238, %v979
      %v1243 = vmin.f32 %v1239, %v984
      %v1244 = vmin.f32 %v1240, %v989
      %v1245 = vmin.f32 %v1241, %v994
      %v1246 = vmin.f32 %v1242, %v999
      %v1247 = vmin.f32 %v1243, %v1004
      %v1248 = vmin.f32 %v1244, %v1009
      %v1249 = vmin.f32 %v1245, %v1246
      %v1250 = vmin.f32 %v1247, %v1248
      %v1251 = vmin.f32 %v1249, %v1250
      %v1252 = vrot.slane %v1251, 4
      %v1253 = vmin.f32 %v1251, %v1252
      %v1254 = vrot.slane %v1253, 2
      %v1255 = vmin.f32 %v1253, %v1254
      %v1256 = vrot.slane %v1255, 1
      %v1257 = vmin.f32 %v1255, %v1256
      %v1258 = vmin.f32 %v1159, %v1179
      %v1259 = vmin.f32 %v1164, %v1184
      %v1260 = vmin.f32 %v1169, %v1189
      %v1261 = vmin.f32 %v1174, %v1194
      %v1262 = vmin.f32 %v1258, %v1199
      %v1263 = vmin.f32 %v1259, %v1204
      %v1264 = vmin.f32 %v1260, %v1209
      %v1265 = vmin.f32 %v1261, %v1214
      %v1266 = vmin.f32 %v1262, %v1219
      %v1267 = vmin.f32 %v1263, %v1224
      %v1268 = vmin.f32 %v1264, %v1229
      %v1269 = vmin.f32 %v1265, %v1234
      %v1270 = vmin.f32 %v1266, %v1267
      %v1271 = vmin.f32 %v1268, %v1269
      %v1272 = vmin.f32 %v1270, %v1271
      %v1273 = vrot.slane %v1272, 4
      %v1274 = vmin.f32 %v1272, %v1273
      %v1275 = vrot.slane %v1274, 2
      %v1276 = vmin.f32 %v1274, %v1275
      %v1277 = vrot.slane %v1276, 1
      %v1278 = vmin.f32 %v1276, %v1277
      %v1279 = vmax.f32 %v1257, 0.0
      %v1280 = vadd.f32 %v1279, 1e-06
      %v1281 = vrsqrt.pop %v1280
      %v1282 = vmul.f32 %v1280, %v1281
      %vm1283 = vcmp.eq.f32.partialorder %v1280, inf
      %v1284 = vsel %vm1283, %v1280, %v1282
      %vm1285 = vcmp.eq.f32.partialorder %v1280, 0.0
      %v1286 = vand.u32 %v1280, 2147483648
      %v1287 = vsel %vm1285, %v1286, %v1284
      %v1288 = vmax.f32 %v1278, 0.0
      %v1289 = vadd.f32 %v1288, 1e-06
      %v1290 = vrsqrt.pop %v1289
      %v1291 = vmul.f32 %v1289, %v1290
      %vm1292 = vcmp.eq.f32.partialorder %v1289, inf
      %v1293 = vsel %vm1292, %v1289, %v1291
      %vm1294 = vcmp.eq.f32.partialorder %v1289, 0.0
      %v1295 = vand.u32 %v1289, 2147483648
      %v1296 = vsel %vm1294, %v1295, %v1293
      %v1297 = vadd.f32 %v1287, %v1296
      %v1298 = vadd.f32 %v778, %v1297
      %1299 = vst [vmem:[%s261] sm:$0x1] %v1298
      %p1300 = scmp.lt.s32.totalorder %s15, 1
      %s1301 = scalar_select %p1300, %s15, 1
      %s1302 = scalar_lea.vmem %s4, %s1301
      // Predicated region
      $region37: #{chamfer_loss.1} parent=35 // pred_check
        %p1303 = pneg %p137
      $region38: #{chamfer_loss.1} parent=35 // pred_check_branch
        %1305 = sbr.rel (%p1303) target = $region40
      $region39: #{chamfer_loss.1} parent=35 // pred_region
        _
      $region40: #{chamfer_loss.1} parent=35 // pred_fallthru
        _
    $region36: #{chamfer_loss.1} parent=5 // pred_fallthru
      _
    %p1306 = scmp.le.s32.totalorder 2, %s10
    // Predicated region
    $region41: #{chamfer_loss.1} parent=5 // pred_check
      %p1307 = pneg %p1306
    $region42: #{chamfer_loss.1} parent=5 // pred_check_branch
      %1309 = sbr.rel (%p1307) target = $region44
    $region43: #{chamfer_loss.1} parent=5 // pred_region
      %s1310 = ssub.s32 %s10, 2
      // Predicated region
      $region45: #{chamfer_loss.1} parent=43 // pred_check
        %p1311 = pneg %p143
      $region46: #{chamfer_loss.1} parent=43 // pred_check_branch
        %1313 = sbr.rel (%p1311) target = $region48
      $region47: #{chamfer_loss.1} parent=43 // pred_region
        %p1314 = scmp.lt.s32.totalorder %s16, 1
        %s1315 = scalar_select %p1314, %s16, 1
        %s1316 = scalar_lea.vmem %s4, %s1315
      $region48: #{chamfer_loss.1} parent=43 // pred_fallthru
        _
    $region44: #{chamfer_loss.1} parent=5 // pred_fallthru
      _
  $region6: #{chamfer_loss.1} parent=0 // loop_footer
    %s14 = sadd.s32 1, %s10
  $region7: #{chamfer_loss.1} parent=0 // loop_footer_branch
    %9 = sbr.rel target = $region3
  $region8: #{chamfer_loss.1} parent=0 // loop_exit
    _

</llo_original>
